<compile_context>
chip_gen: v5e
topology: v5e:2x2
jax: 0.10.0
libtpu: 0.0.40
codegen_flags: <defaults>
</compile_context>

<pallas_src>
import functools

import jax
import jax.numpy as jnp
from jax.experimental import pallas as pl
from jax.experimental.pallas import tpu as pltpu

IN_DIM = 8
H1_DIM = 16
H2_DIM = 8
OUT_DIM = 3


def mlp_kernel(x_ref, w1_ref, b1_ref, w2_ref, b2_ref, w3_ref, b3_ref, o_ref):
    # relu(x@W1+b1) -> relu(h@W2+b2) -> h@W3+b3, fused on the current batch tile.
    x = x_ref[...]
    h1 = jnp.dot(x, w1_ref[...], preferred_element_type=jnp.float32) + b1_ref[...]
    h1 = jnp.maximum(h1, 0.0)
    h2 = jnp.dot(h1, w2_ref[...], preferred_element_type=jnp.float32) + b2_ref[...]
    h2 = jnp.maximum(h2, 0.0)
    h3 = jnp.dot(h2, w3_ref[...], preferred_element_type=jnp.float32) + b3_ref[...]
    o_ref[...] = h3.astype(o_ref.dtype)


def _round_up(n, m):
    return ((n + m - 1) // m) * m


@functools.partial(jax.jit, static_argnames=("block_b",))
def dnn_forward(x, params, block_b=2048):
    w1, b1, w2, b2, w3, b3 = params
    B, in_dim = x.shape
    assert in_dim == IN_DIM

    # Batch tile: clamp to a multiple of 8 (sublane constraint), and cap it so large
    # batches still produce >= 4 grid steps (v7x megacore only splits a "parallel"
    # axis that has multiple steps; one giant tile would idle one of its 2 TCs).
    block_b = max(8, _round_up(block_b, 8))
    tb = min(block_b, max(8, _round_up(-(-B // 4), 8)))
    grid = -(-B // tb)  # cdiv; Pallas masks the ragged last tile of x/out.

    # Weights/biases: full-extent blocks, constant index_map -> stay resident in VMEM.
    def full(a):
        return pl.BlockSpec(a.shape, lambda i: (0,) * a.ndim)

    flops = 2 * B * (IN_DIM * H1_DIM + H1_DIM * H2_DIM + H2_DIM * OUT_DIM)
    param_bytes = 4 * (IN_DIM * H1_DIM + H1_DIM + H1_DIM * H2_DIM + H2_DIM
                       + H2_DIM * OUT_DIM + OUT_DIM)
    bytes_accessed = 4 * B * (IN_DIM + OUT_DIM) + param_bytes

    return pl.pallas_call(
        mlp_kernel,
        out_shape=jax.ShapeDtypeStruct((B, OUT_DIM), jnp.float32),
        grid_spec=pl.GridSpec(
            grid=(grid,),
            in_specs=[
                pl.BlockSpec((tb, IN_DIM), lambda i: (i, 0)),  # x: tiled along batch
                full(w1), full(b1),
                full(w2), full(b2),
                full(w3), full(b3),
            ],
            out_specs=pl.BlockSpec((tb, OUT_DIM), lambda i: (i, 0)),
        ),
        compiler_params=pltpu.CompilerParams(
            # Batch rows are independent: lets v7x shard grid steps across its 2 TCs;
            # neutral on v5e/v6e.
            dimension_semantics=("parallel",),
        ),
        cost_estimate=pl.CostEstimate(
            flops=flops, transcendentals=0, bytes_accessed=bytes_accessed),
    )(x, w1, b1, w2, b2, w3, b3)


def init_params(key):
    # Deterministic init mirroring nn.Linear shapes: fc1(8->16), fc2(16->8), fc3(8->3).
    # Weights stored as (in, out) so the kernel computes y = x @ W + b directly;
    # biases kept 2D (1, out) for a clean VMEM layout.
    k1, k2, k3, k4, k5, k6 = jax.random.split(key, 6)

    def uniform(k, shape, fan_in):
        bound = 1.0 / jnp.sqrt(fan_in)
        return jax.random.uniform(k, shape, jnp.float32, -bound, bound)

    w1 = uniform(k1, (IN_DIM, H1_DIM), float(IN_DIM))
    b1 = uniform(k2, (1, H1_DIM), float(IN_DIM))
    w2 = uniform(k3, (H1_DIM, H2_DIM), float(H1_DIM))
    b2 = uniform(k4, (1, H2_DIM), float(H1_DIM))
    w3 = uniform(k5, (H2_DIM, OUT_DIM), float(H2_DIM))
    b3 = uniform(k6, (1, OUT_DIM), float(H2_DIM))
    return (w1, b1, w2, b2, w3, b3)


def dnn_reference(x, params):
    w1, b1, w2, b2, w3, b3 = params
    h = jnp.maximum(x @ w1 + b1, 0.0)
    h = jnp.maximum(h @ w2 + b2, 0.0)
    return h @ w3 + b3


if __name__ == "__main__":
    key = jax.random.PRNGKey(0)
    pkey, xkey, xkey2, xkey3 = jax.random.split(key, 4)
    params = init_params(pkey)

    # Small demo batch (single grid step).
    batch = 8
    x = jax.random.normal(xkey, (batch, IN_DIM), jnp.float32)
    out = jax.block_until_ready(dnn_forward(x, params))
    ref = dnn_reference(x, params)
    assert out.shape == (batch, OUT_DIM), out.shape
    assert jnp.allclose(out, ref, atol=1e-5, rtol=1e-5), "mismatch vs reference (B=8)"

    # Multi-step grid + ragged (masked) last batch tile, small explicit tile.
    batch2 = 20
    x2 = jax.random.normal(xkey2, (batch2, IN_DIM), jnp.float32)
    out2 = jax.block_until_ready(dnn_forward(x2, params, block_b=8))
    ref2 = dnn_reference(x2, params)
    assert out2.shape == (batch2, OUT_DIM), out2.shape
    assert jnp.allclose(out2, ref2, atol=1e-5, rtol=1e-5), "mismatch vs reference (B=20)"

    # Default tile path: tb gets capped to keep >= 4 grid steps, ragged last tile.
    batch3 = 100
    x3 = jax.random.normal(xkey3, (batch3, IN_DIM), jnp.float32)
    out3 = jax.block_until_ready(dnn_forward(x3, params))
    ref3 = dnn_reference(x3, params)
    assert out3.shape == (batch3, OUT_DIM), out3.shape
    assert jnp.allclose(out3, ref3, atol=1e-5, rtol=1e-5), "mismatch vs reference (B=100)"

    print("KERNEL_OK")
</pallas_src>

<mosaic_0001>
module attributes {stable_mosaic.version = 11 : i64} {
  func.func @mlp_kernel(%arg0: i32, %arg1: memref<8x8xf32, #tpu.memory_space<vmem>>, %arg2: memref<8x16xf32, #tpu.memory_space<vmem>>, %arg3: memref<1x16xf32, #tpu.memory_space<vmem>>, %arg4: memref<16x8xf32, #tpu.memory_space<vmem>>, %arg5: memref<1x8xf32, #tpu.memory_space<vmem>>, %arg6: memref<8x3xf32, #tpu.memory_space<vmem>>, %arg7: memref<1x3xf32, #tpu.memory_space<vmem>>, %arg8: memref<8x3xf32, #tpu.memory_space<vmem>>) attributes {dimension_semantics = [#tpu.dimension_semantics<parallel>], iteration_bounds = array<i64: 1>, scalar_prefetch = 0 : i64, scratch_operands = 0 : i64, tpu.core_type = #tpu.core_type<tc>, window_params = [{transform_indices = @transform_0, window_bounds = array<i64: 8, 8>}, {pipeline_mode = #tpu.pipeline_mode<synchronous>, transform_indices = @transform_1, window_bounds = array<i64: 8, 16>}, {pipeline_mode = #tpu.pipeline_mode<synchronous>, transform_indices = @transform_2, window_bounds = array<i64: 1, 16>}, {pipeline_mode = #tpu.pipeline_mode<synchronous>, transform_indices = @transform_3, window_bounds = array<i64: 16, 8>}, {pipeline_mode = #tpu.pipeline_mode<synchronous>, transform_indices = @transform_4, window_bounds = array<i64: 1, 8>}, {pipeline_mode = #tpu.pipeline_mode<synchronous>, transform_indices = @transform_5, window_bounds = array<i64: 8, 3>}, {pipeline_mode = #tpu.pipeline_mode<synchronous>, transform_indices = @transform_6, window_bounds = array<i64: 1, 3>}, {transform_indices = @transform_7, window_bounds = array<i64: 8, 3>}]} {
    %c0 = arith.constant 0 : index
    %c0_0 = arith.constant 0 : index
    %0 = vector.load %arg1[%c0, %c0_0] : memref<8x8xf32, #tpu.memory_space<vmem>>, vector<8x8xf32>
    %c0_1 = arith.constant 0 : index
    %c0_2 = arith.constant 0 : index
    %1 = vector.load %arg2[%c0_1, %c0_2] : memref<8x16xf32, #tpu.memory_space<vmem>>, vector<8x16xf32>
    %cst = arith.constant dense<0.000000e+00> : vector<8x16xf32>
    %2 = tpu.matmul %0, %1, %cst {dimension_numbers = #tpu.dot_dimension_numbers<[1], [0], [0], [1], [0, 0, 1, 1], [], []>} : vector<8x8xf32>, vector<8x16xf32>, vector<8x16xf32> -> vector<8x16xf32>
    %c0_3 = arith.constant 0 : index
    %c0_4 = arith.constant 0 : index
    %3 = vector.load %arg3[%c0_3, %c0_4] : memref<1x16xf32, #tpu.memory_space<vmem>>, vector<1x16xf32>
    %4 = vector.broadcast %3 : vector<1x16xf32> to vector<8x16xf32>
    %5 = arith.addf %2, %4 : vector<8x16xf32>
    %cst_5 = arith.constant 0.000000e+00 : f32
    %6 = vector.broadcast %cst_5 : f32 to vector<8x16xf32>
    %7 = arith.maximumf %5, %6 : vector<8x16xf32>
    %c0_6 = arith.constant 0 : index
    %c0_7 = arith.constant 0 : index
    %8 = vector.load %arg4[%c0_6, %c0_7] : memref<16x8xf32, #tpu.memory_space<vmem>>, vector<16x8xf32>
    %cst_8 = arith.constant dense<0.000000e+00> : vector<8x8xf32>
    %9 = tpu.matmul %7, %8, %cst_8 {dimension_numbers = #tpu.dot_dimension_numbers<[1], [0], [0], [1], [0, 0, 1, 1], [], []>} : vector<8x16xf32>, vector<16x8xf32>, vector<8x8xf32> -> vector<8x8xf32>
    %c0_9 = arith.constant 0 : index
    %c0_10 = arith.constant 0 : index
    %10 = vector.load %arg5[%c0_9, %c0_10] : memref<1x8xf32, #tpu.memory_space<vmem>>, vector<1x8xf32>
    %11 = vector.broadcast %10 : vector<1x8xf32> to vector<8x8xf32>
    %12 = arith.addf %9, %11 : vector<8x8xf32>
    %cst_11 = arith.constant 0.000000e+00 : f32
    %13 = vector.broadcast %cst_11 : f32 to vector<8x8xf32>
    %14 = arith.maximumf %12, %13 : vector<8x8xf32>
    %c0_12 = arith.constant 0 : index
    %c0_13 = arith.constant 0 : index
    %15 = vector.load %arg6[%c0_12, %c0_13] : memref<8x3xf32, #tpu.memory_space<vmem>>, vector<8x3xf32>
    %cst_14 = arith.constant dense<0.000000e+00> : vector<8x3xf32>
    %16 = tpu.matmul %14, %15, %cst_14 {dimension_numbers = #tpu.dot_dimension_numbers<[1], [0], [0], [1], [0, 0, 1, 1], [], []>} : vector<8x8xf32>, vector<8x3xf32>, vector<8x3xf32> -> vector<8x3xf32>
    %c0_15 = arith.constant 0 : index
    %c0_16 = arith.constant 0 : index
    %17 = vector.load %arg7[%c0_15, %c0_16] : memref<1x3xf32, #tpu.memory_space<vmem>>, vector<1x3xf32>
    %18 = vector.broadcast %17 : vector<1x3xf32> to vector<8x3xf32>
    %19 = arith.addf %16, %18 : vector<8x3xf32>
    %c0_17 = arith.constant 0 : index
    %c0_18 = arith.constant 0 : index
    %20 = vector.load %arg8[%c0_17, %c0_18] : memref<8x3xf32, #tpu.memory_space<vmem>>, vector<8x3xf32>
    tpu.vector_store %arg8[%c0_17, %c0_18], %19 {strides = array<i32>} : memref<8x3xf32, #tpu.memory_space<vmem>>, vector<8x3xf32>,
    return
  }
  func.func @transform_0(%arg0: i32) -> (i32, i32) {
    %c0_i32 = arith.constant 0 : i32
    %c0_i32_0 = arith.constant 0 : i32
    return %arg0, %c0_i32 : i32, i32
  }
  func.func @transform_1(%arg0: i32) -> (i32, i32) {
    %c0_i32 = arith.constant 0 : i32
    %c0_i32_0 = arith.constant 0 : i32
    %c0_i32_1 = arith.constant 0 : i32
    return %c0_i32, %c0_i32_0 : i32, i32
  }
  func.func @transform_2(%arg0: i32) -> (i32, i32) {
    %c0_i32 = arith.constant 0 : i32
    %c0_i32_0 = arith.constant 0 : i32
    %c0_i32_1 = arith.constant 0 : i32
    return %c0_i32, %c0_i32_0 : i32, i32
  }
  func.func @transform_3(%arg0: i32) -> (i32, i32) {
    %c0_i32 = arith.constant 0 : i32
    %c0_i32_0 = arith.constant 0 : i32
    %c0_i32_1 = arith.constant 0 : i32
    return %c0_i32, %c0_i32_0 : i32, i32
  }
  func.func @transform_4(%arg0: i32) -> (i32, i32) {
    %c0_i32 = arith.constant 0 : i32
    %c0_i32_0 = arith.constant 0 : i32
    %c0_i32_1 = arith.constant 0 : i32
    return %c0_i32, %c0_i32_0 : i32, i32
  }
  func.func @transform_5(%arg0: i32) -> (i32, i32) {
    %c0_i32 = arith.constant 0 : i32
    %c0_i32_0 = arith.constant 0 : i32
    %c0_i32_1 = arith.constant 0 : i32
    return %c0_i32, %c0_i32_0 : i32, i32
  }
  func.func @transform_6(%arg0: i32) -> (i32, i32) {
    %c0_i32 = arith.constant 0 : i32
    %c0_i32_0 = arith.constant 0 : i32
    %c0_i32_1 = arith.constant 0 : i32
    return %c0_i32, %c0_i32_0 : i32, i32
  }
  func.func @transform_7(%arg0: i32) -> (i32, i32) {
    %c0_i32 = arith.constant 0 : i32
    %c0_i32_0 = arith.constant 0 : i32
    return %arg0, %c0_i32 : i32, i32
  }
}

</mosaic_0001>

<llo_original>
// kernel: dnn_forward.1
$region0: #{dnn_forward.1}
  #allocation0 [shape = 'u32[]', space=smem, size = 0x4, offset = 0x4, fixed_abs, tag = 'smem constant byte address 0x4 - core index']
  #allocation1 [shape = 'u32[72,128]{1,0:T(1,128)}', space=vmem, size = 0x9000, scoped, tag = 'internal scratch']
  %s0 = inlined_call_operand.vmem [shape: f32[8,8], index: 0, kind: input, shape index: {}]
  %s1 = inlined_call_operand.vmem [shape: f32[8,16], index: 1, kind: input, shape index: {}]
  %s2 = inlined_call_operand.vmem [shape: f32[1,16], index: 2, kind: input, shape index: {}]
  %s3 = inlined_call_operand.vmem [shape: f32[16,8], index: 3, kind: input, shape index: {}]
  %s4 = inlined_call_operand.vmem [shape: f32[1,8], index: 4, kind: input, shape index: {}]
  %s5 = inlined_call_operand.vmem [shape: f32[8,3], index: 5, kind: input, shape index: {}]
  %s6 = inlined_call_operand.vmem [shape: f32[1,3], index: 6, kind: input, shape index: {}]
  %s7 = inlined_call_operand.vmem [shape: f32[8,3], index: 7, kind: output, shape index: {}]
  %s8 = sld [smem:[#allocation0]]
  $region38: #{dnn_forward.1} parent=0
    _
  %s10 = ssub.s32 1, %s8
  %s11 = scalar_select 0, %s10, %s8
  // Predicated region
  $region2: #{dnn_forward.1} parent=0 // pred_check
    _
  $region3: #{dnn_forward.1} parent=0 // pred_check_branch
    %13 = sbr.rel (0) target = $region5
  $region4: #{dnn_forward.1} parent=0 // pred_region
    _
  $region5: #{dnn_forward.1} parent=0 // pred_fallthru
    _
  // Predicated region
  $region6: #{dnn_forward.1} parent=0 // pred_check
    _
  $region7: #{dnn_forward.1} parent=0 // pred_check_branch
    %15 = sbr.rel (0) target = $region9
  $region8: #{dnn_forward.1} parent=0 // pred_region
    _
  $region9: #{dnn_forward.1} parent=0 // pred_fallthru
    _
  // Predicated region
  $region10: #{dnn_forward.1} parent=0 // pred_check
    _
  $region11: #{dnn_forward.1} parent=0 // pred_check_branch
    %17 = sbr.rel (0) target = $region13
  $region12: #{dnn_forward.1} parent=0 // pred_region
    _
  $region13: #{dnn_forward.1} parent=0 // pred_fallthru
    _
  // Predicated region
  $region14: #{dnn_forward.1} parent=0 // pred_check
    _
  $region15: #{dnn_forward.1} parent=0 // pred_check_branch
    %19 = sbr.rel (0) target = $region17
  $region16: #{dnn_forward.1} parent=0 // pred_region
    _
  $region17: #{dnn_forward.1} parent=0 // pred_fallthru
    _
  // Predicated region
  $region18: #{dnn_forward.1} parent=0 // pred_check
    _
  $region19: #{dnn_forward.1} parent=0 // pred_check_branch
    %21 = sbr.rel (0) target = $region21
  $region20: #{dnn_forward.1} parent=0 // pred_region
    _
  $region21: #{dnn_forward.1} parent=0 // pred_fallthru
    _
  // Predicated region
  $region22: #{dnn_forward.1} parent=0 // pred_check
    _
  $region23: #{dnn_forward.1} parent=0 // pred_check_branch
    %23 = sbr.rel (0) target = $region25
  $region24: #{dnn_forward.1} parent=0 // pred_region
    _
  $region25: #{dnn_forward.1} parent=0 // pred_fallthru
    _
  // Predicated region
  $region26: #{dnn_forward.1} parent=0 // pred_check
    _
  $region27: #{dnn_forward.1} parent=0 // pred_check_branch
    %25 = sbr.rel (0) target = $region29
  $region28: #{dnn_forward.1} parent=0 // pred_region
    _
  $region29: #{dnn_forward.1} parent=0 // pred_fallthru
    _
  %v26 = vld [vmem:[%s0] sm:$0xff]
  %v27 = vld [vmem:[%s1] sm:$0xff]
  %v28 = vld [vmem:[%s2] sm:$0x1]
  %v30 = vperm.slane %v28, 0
  %vm32 = vcmask 64512
  %v34 = vsel %vm32, %v26, 0
  %36 = vmatpush.msra.mxu0 0.0
  %37 = vmatpush.msra.mxu0 0.0
  %38 = vmatpush.msra.mxu0 0.0
  %39 = vmatpush.msra.mxu0 0.0
  %40 = vmatpush.msra.mxu0 0.0
  %41 = vmatpush.msra.mxu0 0.0
  %42 = vmatpush.msra.mxu0 0.0
  %43 = vmatpush.msra.mxu0 0.0
  %44 = vmatpush.msra.mxu0 0.0
  %45 = vmatpush.msra.mxu0 0.0
  %46 = vmatpush.msra.mxu0 0.0
  %47 = vmatpush.msra.mxu0 0.0
  %48 = vmatpush.msra.mxu0 0.0
  %49 = vmatpush.msra.mxu0 0.0
  %50 = vmatpush.msra.mxu0 0.0
  %51 = vmatpush.msra.mxu0 %v27
  %52 = vmatmul.f32.gmra.mxu0 %v34
  %v53 = vpop.f32.mrf.mxu0
  %v54 = vadd.f32 %v30, %v53
  %55 = vdwg.mxu0
  %v56 = vmax.f32 %v54, 0.0
  %v57 = vld [vmem:[%s3] sm:$0xff]
  %v58 = vld [vmem:[%s3 + $0x8] sm:$0xff]
  %v59 = vld [vmem:[%s4] sm:$0x1]
  %v61 = vperm.slane %v59, 0
  %vm63 = vcmask 130048
  %v65 = vsel %vm63, %v56, 0
  %67 = vmatpush.msra.mxu0 0.0
  %68 = vmatpush.msra.mxu0 0.0
  %69 = vmatpush.msra.mxu0 0.0
  %70 = vmatpush.msra.mxu0 0.0
  %71 = vmatpush.msra.mxu0 0.0
  %72 = vmatpush.msra.mxu0 0.0
  %73 = vmatpush.msra.mxu0 0.0
  %74 = vmatpush.msra.mxu0 0.0
  %75 = vmatpush.msra.mxu0 0.0
  %76 = vmatpush.msra.mxu0 0.0
  %77 = vmatpush.msra.mxu0 0.0
  %78 = vmatpush.msra.mxu0 0.0
  %79 = vmatpush.msra.mxu0 0.0
  %80 = vmatpush.msra.mxu0 0.0
  %81 = vmatpush.msra.mxu0 %v58
  %82 = vmatpush.msra.mxu0 %v57
  %83 = vmatmul.f32.gmra.mxu0 %v65
  %v84 = vpop.f32.mrf.mxu0
  %v85 = vadd.f32 %v61, %v84
  %86 = vdwg.mxu0
  %v87 = vmax.f32 %v85, 0.0
  %v88 = vld [vmem:[%s5] sm:$0xff]
  %v89 = vld [vmem:[%s6] sm:$0x1]
  %v91 = vperm.slane %v89, 0
  %v94 = vsel %vm32, %v87, 0
  %96 = vmatpush.msra.mxu0 0.0
  %97 = vmatpush.msra.mxu0 0.0
  %98 = vmatpush.msra.mxu0 0.0
  %99 = vmatpush.msra.mxu0 0.0
  %100 = vmatpush.msra.mxu0 0.0
  %101 = vmatpush.msra.mxu0 0.0
  %102 = vmatpush.msra.mxu0 0.0
  %103 = vmatpush.msra.mxu0 0.0
  %104 = vmatpush.msra.mxu0 0.0
  %105 = vmatpush.msra.mxu0 0.0
  %106 = vmatpush.msra.mxu0 0.0
  %107 = vmatpush.msra.mxu0 0.0
  %108 = vmatpush.msra.mxu0 0.0
  %109 = vmatpush.msra.mxu0 0.0
  %110 = vmatpush.msra.mxu0 0.0
  %111 = vmatpush.msra.mxu0 %v88
  %112 = vmatmul.f32.gmra.mxu0 %v94
  %v113 = vpop.f32.mrf.mxu0
  %v114 = vadd.f32 %v91, %v113
  %115 = vdwg.mxu0
  %vm116 = vcmask 23552
  %117 = vst.msk [vmem:[%s7] sm:$0xff] %vm116, %v114
  // Predicated region
  $region30: #{dnn_forward.1} parent=0 // pred_check
    _
  $region31: #{dnn_forward.1} parent=0 // pred_check_branch
    %119 = sbr.rel (0) target = $region33
  $region32: #{dnn_forward.1} parent=0 // pred_region
    _
  $region33: #{dnn_forward.1} parent=0 // pred_fallthru
    _
  // Predicated region
  $region34: #{dnn_forward.1} parent=0 // pred_check
    _
  $region35: #{dnn_forward.1} parent=0 // pred_check_branch
    %121 = sbr.rel (0) target = $region37
  $region36: #{dnn_forward.1} parent=0 // pred_region
    _
  $region37: #{dnn_forward.1} parent=0 // pred_fallthru
    _

</llo_original>
